<compile_context>
chip_gen: v5e
topology: v5e:2x2
jax: 0.10.0
libtpu: 0.0.40
codegen_flags: <defaults>
</compile_context>

<pallas_src>
import math

import jax
import jax.numpy as jnp
from jax.experimental import pallas as pl
from jax.experimental.pallas import tpu as pltpu


def block_kernel(x_ref, w1_ref, b1_ref, w2_ref, b2_ref, o_ref):
    # x_ref:  (TM, P*C)   f32 lane-dense row tile (P packed pixels per row)
    # w1_ref: (P*C, P*2C) bf16 block-diagonal pwconv1 weight (single-buffered)
    # b1_ref: (1, P*2C)   f32
    # w2_ref: (P*2C, P*C) bf16 block-diagonal pwconv2 weight (single-buffered)
    # b2_ref: (1, P*C)    f32
    # o_ref:  (TM, P*C)   f32 output tile
    x = x_ref[...]                                   # exact f32 kept for the residual
    x_bf = x.astype(jnp.bfloat16)                    # bf16 only on the MXU path

    # pwconv1 (bf16 MXU, f32 accumulate) + bias + ReLU in f32
    h = jnp.dot(x_bf, w1_ref[...], preferred_element_type=jnp.float32)
    h = jnp.maximum(h + b1_ref[...], 0.0)

    # pwconv2
    y = jnp.dot(h.astype(jnp.bfloat16), w2_ref[...],
                preferred_element_type=jnp.float32)
    y = y + b2_ref[...]

    # residual (drop_path == Identity at rate 0.0) + final ReLU, in f32
    o_ref[...] = jnp.maximum(x + y, 0.0).astype(o_ref.dtype)


def _pack_factor(c, max_pack=4):
    """Pixels packed per lane-dense row.  Capped to bound kron FLOP waste."""
    if c % 128 == 0:
        return 1
    p = math.lcm(c, 128) // c
    return p if p <= max_pack else 1


def _const_spec(shape):
    """Grid-invariant operand: single-buffer it if this JAX supports pipeline_mode."""
    try:
        return pl.BlockSpec(shape, lambda i: (0, 0), pipeline_mode=pl.Buffered(1))
    except TypeError:  # older BlockSpec signature
        return pl.BlockSpec(shape, lambda i: (0, 0))


def convnext_block(x, w1, b1, w2, b2, *, tm=4096, vmem_budget=36 << 20):
    """ConvNeXt Block forward: relu(x + pwconv2(relu(pwconv1(x)))).

    x: (..., C) float32, Linear applied over the last dim. Returns same shape/dtype.
    w1: (C, 2C), b1: (2C,), w2: (2C, C), b2: (C,)  (torch weights transposed).
    """
    orig_shape = x.shape
    C = orig_shape[-1]
    C2 = 2 * C

    pack = _pack_factor(C)
    Cp, C2p = pack * C, pack * C2

    # Block-diagonal weights so the per-pixel Linear acts on packed rows.
    if pack > 1:
        eye = jnp.eye(pack, dtype=w1.dtype)
        w1_p = jnp.kron(eye, w1)          # (P*C, P*2C)
        w2_p = jnp.kron(eye, w2)          # (P*2C, P*C)
        b1_p = jnp.tile(b1, pack)
        b2_p = jnp.tile(b2, pack)
    else:
        w1_p, w2_p, b1_p, b2_p = w1, w2, b1, b2

    x2d = x.reshape(-1, C)
    rows = x2d.shape[0]

    # Only pad rows up to a multiple of `pack` (at most pack-1 rows).  Ragged
    # last row-tiles of the grid are handled by Pallas edge masking.
    pad_rows = (-rows) % pack
    if pad_rows:
        x2d = jnp.pad(x2d, ((0, pad_rows), (0, 0)))
    rows_p = rows + pad_rows
    wide_rows = rows_p // pack
    x_wide = x2d.reshape(wide_rows, Cp)              # stays f32: no extra cast pass

    # VMEM footprint: weights single-buffered, x/out tiles (f32) double-buffered.
    w_bytes = 2 * (Cp * C2p) * 2 + (C2p + Cp) * 4
    per_row_bytes = 2 * (Cp * 4) + 2 * (Cp * 4)
    tm_cap = max(8, (vmem_budget - w_bytes) // per_row_bytes)
    tm_cap = min(tm, (tm_cap // 8) * 8)
    tm_eff = wide_rows if wide_rows <= tm_cap else tm_cap
    grid = pl.cdiv(wide_rows, tm_eff)

    vmem_limit = int(1.25 * (tm_eff * per_row_bytes + w_bytes)) + (2 << 20)
    vmem_limit = max(32 << 20, min(vmem_limit, 60 << 20))   # v7x-safe ceiling

    cost = pl.CostEstimate(
        flops=8 * rows * C * C,                       # two useful C<->2C matmuls
        transcendentals=0,
        bytes_accessed=rows * C * 4 * 2 + w_bytes,    # x in + out + weights
    )

    out = pl.pallas_call(
        block_kernel,
        out_shape=jax.ShapeDtypeStruct((wide_rows, Cp), x.dtype),
        grid_spec=pltpu.PrefetchScalarGridSpec(
            num_scalar_prefetch=0,
            grid=(grid,),
            in_specs=[
                pl.BlockSpec((tm_eff, Cp), lambda i: (i, 0)),   # x row tile
                _const_spec((Cp, C2p)),                         # w1 (full, 1-buf)
                _const_spec((1, C2p)),                          # b1
                _const_spec((C2p, Cp)),                         # w2 (full, 1-buf)
                _const_spec((1, Cp)),                           # b2
            ],
            out_specs=pl.BlockSpec((tm_eff, Cp), lambda i: (i, 0)),
        ),
        compiler_params=pltpu.CompilerParams(
            dimension_semantics=("parallel",),
            vmem_limit_bytes=vmem_limit,
        ),
        cost_estimate=cost,
    )(
        x_wide,
        w1_p.astype(jnp.bfloat16),
        b1_p.reshape(1, C2p).astype(jnp.float32),
        w2_p.astype(jnp.bfloat16),
        b2_p.reshape(1, Cp).astype(jnp.float32),
    )

    out = out.reshape(rows_p, C)
    if pad_rows:
        out = out[:rows]
    return out.reshape(orig_shape)


def reference(x, w1, b1, w2, b2):
    # Mirrors the kernel's precision contract: bf16 inputs/weights on the two
    # matmuls with f32 accumulation; exact f32 x used for the residual.
    f32 = jnp.float32
    xb = x.astype(jnp.bfloat16).astype(f32)
    w1b = w1.astype(jnp.bfloat16).astype(f32)
    w2b = w2.astype(jnp.bfloat16).astype(f32)
    h = jnp.maximum(xb @ w1b + b1, 0.0)
    hb = h.astype(jnp.bfloat16).astype(f32)
    y = hb @ w2b + b2
    return jnp.maximum(x + y, 0.0)


if __name__ == "__main__":
    key = jax.random.PRNGKey(0)
    N, H, W, C = 2, 16, 16, 32   # dim = 32, hidden = 2*dim = 64
    C2 = 2 * C

    k_x, k_w1, k_b1, k_w2, k_b2 = jax.random.split(key, 5)
    x = jax.random.normal(k_x, (N, H, W, C), dtype=jnp.float32)

    # Deterministic init (roughly nn.Linear's uniform fan-in scale)
    w1 = jax.random.uniform(k_w1, (C, C2), jnp.float32, -1.0, 1.0) / jnp.sqrt(C)
    b1 = jax.random.uniform(k_b1, (C2,), jnp.float32, -1.0, 1.0) / jnp.sqrt(C)
    w2 = jax.random.uniform(k_w2, (C2, C), jnp.float32, -1.0, 1.0) / jnp.sqrt(C2)
    b2 = jax.random.uniform(k_b2, (C,), jnp.float32, -1.0, 1.0) / jnp.sqrt(C2)

    fwd = jax.jit(convnext_block)
    out = jax.block_until_ready(fwd(x, w1, b1, w2, b2))

    ref = reference(x, w1, b1, w2, b2)
    assert out.shape == x.shape and out.dtype == x.dtype
    assert jnp.allclose(out, ref, atol=1e-2, rtol=1e-2), "mismatch vs reference"

    print("KERNEL_OK")
</pallas_src>

<mosaic_0001>
module attributes {stable_mosaic.version = 11 : i64} {
  func.func @block_kernel(%arg0: i32, %arg1: memref<128x128xf32, #tpu.memory_space<vmem>>, %arg2: memref<128x256xbf16, #tpu.memory_space<vmem>>, %arg3: memref<1x256xf32, #tpu.memory_space<vmem>>, %arg4: memref<256x128xbf16, #tpu.memory_space<vmem>>, %arg5: memref<1x128xf32, #tpu.memory_space<vmem>>, %arg6: memref<128x128xf32, #tpu.memory_space<vmem>>) attributes {dimension_semantics = [#tpu.dimension_semantics<parallel>], iteration_bounds = array<i64: 1>, scalar_prefetch = 0 : i64, scratch_operands = 0 : i64, tpu.core_type = #tpu.core_type<tc>, window_params = [{transform_indices = @transform_0, window_bounds = array<i64: 128, 128>}, {pipeline_mode = #tpu.pipeline_mode<synchronous>, transform_indices = @transform_1, window_bounds = array<i64: 128, 256>}, {pipeline_mode = #tpu.pipeline_mode<synchronous>, transform_indices = @transform_2, window_bounds = array<i64: 1, 256>}, {pipeline_mode = #tpu.pipeline_mode<synchronous>, transform_indices = @transform_3, window_bounds = array<i64: 256, 128>}, {pipeline_mode = #tpu.pipeline_mode<synchronous>, transform_indices = @transform_4, window_bounds = array<i64: 1, 128>}, {transform_indices = @transform_5, window_bounds = array<i64: 128, 128>}]} {
    %c0 = arith.constant 0 : index
    %c0_0 = arith.constant 0 : index
    %0 = vector.load %arg1[%c0, %c0_0] : memref<128x128xf32, #tpu.memory_space<vmem>>, vector<128x128xf32>
    %1 = arith.truncf %0 : vector<128x128xf32> to vector<128x128xbf16>
    %c0_1 = arith.constant 0 : index
    %c0_2 = arith.constant 0 : index
    %2 = vector.load %arg2[%c0_1, %c0_2] : memref<128x256xbf16, #tpu.memory_space<vmem>>, vector<128x256xbf16>
    %cst = arith.constant dense<0.000000e+00> : vector<128x256xf32>
    %3 = tpu.matmul %1, %2, %cst {dimension_numbers = #tpu.dot_dimension_numbers<[1], [0], [0], [1], [0, 0, 1, 1], [], []>} : vector<128x128xbf16>, vector<128x256xbf16>, vector<128x256xf32> -> vector<128x256xf32>
    %c0_3 = arith.constant 0 : index
    %c0_4 = arith.constant 0 : index
    %4 = vector.load %arg3[%c0_3, %c0_4] : memref<1x256xf32, #tpu.memory_space<vmem>>, vector<1x256xf32>
    %5 = vector.broadcast %4 : vector<1x256xf32> to vector<128x256xf32>
    %6 = arith.addf %3, %5 : vector<128x256xf32>
    %cst_5 = arith.constant 0.000000e+00 : f32
    %7 = vector.broadcast %cst_5 : f32 to vector<128x256xf32>
    %8 = arith.maximumf %6, %7 : vector<128x256xf32>
    %9 = arith.truncf %8 : vector<128x256xf32> to vector<128x256xbf16>
    %c0_6 = arith.constant 0 : index
    %c0_7 = arith.constant 0 : index
    %10 = vector.load %arg4[%c0_6, %c0_7] : memref<256x128xbf16, #tpu.memory_space<vmem>>, vector<256x128xbf16>
    %cst_8 = arith.constant dense<0.000000e+00> : vector<128x128xf32>
    %11 = tpu.matmul %9, %10, %cst_8 {dimension_numbers = #tpu.dot_dimension_numbers<[1], [0], [0], [1], [0, 0, 1, 1], [], []>} : vector<128x256xbf16>, vector<256x128xbf16>, vector<128x128xf32> -> vector<128x128xf32>
    %c0_9 = arith.constant 0 : index
    %c0_10 = arith.constant 0 : index
    %12 = vector.load %arg5[%c0_9, %c0_10] : memref<1x128xf32, #tpu.memory_space<vmem>>, vector<1x128xf32>
    %13 = vector.broadcast %12 : vector<1x128xf32> to vector<128x128xf32>
    %14 = arith.addf %11, %13 : vector<128x128xf32>
    %15 = arith.addf %0, %14 : vector<128x128xf32>
    %cst_11 = arith.constant 0.000000e+00 : f32
    %16 = vector.broadcast %cst_11 : f32 to vector<128x128xf32>
    %17 = arith.maximumf %15, %16 : vector<128x128xf32>
    %c0_12 = arith.constant 0 : index
    %c0_13 = arith.constant 0 : index
    %18 = vector.load %arg6[%c0_12, %c0_13] : memref<128x128xf32, #tpu.memory_space<vmem>>, vector<128x128xf32>
    tpu.vector_store %arg6[%c0_12, %c0_13], %17 {strides = array<i32>} : memref<128x128xf32, #tpu.memory_space<vmem>>, vector<128x128xf32>,
    return
  }
  func.func @transform_0(%arg0: i32) -> (i32, i32) {
    %c0_i32 = arith.constant 0 : i32
    %c0_i32_0 = arith.constant 0 : i32
    return %arg0, %c0_i32 : i32, i32
  }
  func.func @transform_1(%arg0: i32) -> (i32, i32) {
    %c0_i32 = arith.constant 0 : i32
    %c0_i32_0 = arith.constant 0 : i32
    %c0_i32_1 = arith.constant 0 : i32
    return %c0_i32, %c0_i32_0 : i32, i32
  }
  func.func @transform_2(%arg0: i32) -> (i32, i32) {
    %c0_i32 = arith.constant 0 : i32
    %c0_i32_0 = arith.constant 0 : i32
    %c0_i32_1 = arith.constant 0 : i32
    return %c0_i32, %c0_i32_0 : i32, i32
  }
  func.func @transform_3(%arg0: i32) -> (i32, i32) {
    %c0_i32 = arith.constant 0 : i32
    %c0_i32_0 = arith.constant 0 : i32
    %c0_i32_1 = arith.constant 0 : i32
    return %c0_i32, %c0_i32_0 : i32, i32
  }
  func.func @transform_4(%arg0: i32) -> (i32, i32) {
    %c0_i32 = arith.constant 0 : i32
    %c0_i32_0 = arith.constant 0 : i32
    %c0_i32_1 = arith.constant 0 : i32
    return %c0_i32, %c0_i32_0 : i32, i32
  }
  func.func @transform_5(%arg0: i32) -> (i32, i32) {
    %c0_i32 = arith.constant 0 : i32
    %c0_i32_0 = arith.constant 0 : i32
    return %arg0, %c0_i32 : i32, i32
  }
}

</mosaic_0001>

<llo_original>
// kernel: tile.13
$region0: #{tile.13}
  #allocation0 [shape = 's32[1]{0}', space=sflag, size = 0x4, scoped, tag = 'scoped memory for tile.13']
  %s0 = inlined_call_operand.vmem [shape: f32[64], index: 0, kind: input, shape index: {}]
  %s1 = inlined_call_operand.vmem [shape: f32[4,64], index: 1, kind: output, shape index: {}]
  // Predicated region
  $region2: #{tile.13} parent=0 // pred_check
    _
  $region3: #{tile.13} parent=0 // pred_check_branch
    %3 = sbr.rel (0) target = $region5
  $region4: #{tile.13} parent=0 // pred_region
    _
  $region5: #{tile.13} parent=0 // pred_fallthru
    _
  %v4 = vld [vmem:[%s0] ss:$0 sm:$0xff]
  %5 = vst [vmem:[%s1] sm:$0xf] %v4

// kernel: tile.18
$region0: #{tile.18}
  %s0 = inlined_call_operand.vmem [shape: f32[4,64], index: 0, kind: input, shape index: {}]
  %s1 = inlined_call_operand.vmem [shape: f32[1,256], index: 1, kind: output, shape index: {}]
  $region1: #{tile.18} parent=0
    #allocation0 [shape = 'u8[8192]{0}', space=vmem, size = 0x2000, scoped, tag = 'scoped mem for output reshape']
    #allocation1 [shape = 'u8[4096]{0}', space=vmem, size = 0x1000, scoped, tag = 'scoped mem for input reshape']
    %s3 = ssub.s32 16, 1
    %v4 = vld [vmem:[%s0] sm:%s3]
    %5 = vst [vmem:[#allocation1] sm:%s3] %v4
    %s6 = smov 3
    %v7 = vld [vmem:[#allocation1] ss:$2 sm:%s6]
    %vm8 = vcmask 523264
    %9 = vst.msk [vmem:[#allocation0] ss:$8 sm:$0x3] %vm8, %v7
    %s10 = scalar_lea.vmem [#allocation1], 1
    %s11 = smov 3
    %v12 = vld [vmem:[%s10] ss:$2 sm:%s11]
    %13 = vrot.lane.b32.xlu0 %v12, 64
    %v14 = vpop.permute.xlu0 %13
    %vm15 = vcmask 1048064
    %16 = vst.msk [vmem:[#allocation0] ss:$8 sm:$0x3] %vm15, %v14
    %s18 = ssub.s32 2, 1
    %v19 = vld [vmem:[#allocation0] sm:%s18]
    %s21 = ssub.s32 2, 1
    %22 = vst [vmem:[%s1] sm:%s21] %v19
    %s23 = scalar_lea.vmem [#allocation0], 8
    %v24 = vld [vmem:[%s23] sm:%s18]
    %s26 = ssub.s32 2, 1
    %s27 = scalar_lea.vmem %s1, 1
    %28 = vst [vmem:[%s27] sm:%s26] %v24

// kernel: tile.17
$region0: #{tile.17}
  #allocation0 [shape = 's32[1]{0}', space=sflag, size = 0x4, scoped, tag = 'scoped memory for tile.17']
  %s0 = inlined_call_operand.vmem [shape: f32[32], index: 0, kind: input, shape index: {}]
  %s1 = inlined_call_operand.vmem [shape: f32[4,32], index: 1, kind: output, shape index: {}]
  // Predicated region
  $region2: #{tile.17} parent=0 // pred_check
    _
  $region3: #{tile.17} parent=0 // pred_check_branch
    %3 = sbr.rel (0) target = $region5
  $region4: #{tile.17} parent=0 // pred_region
    _
  $region5: #{tile.17} parent=0 // pred_fallthru
    _
  %v4 = vld [vmem:[%s0] ss:$0 sm:$0xff]
  %5 = vst [vmem:[%s1] sm:$0xf] %v4

// kernel: tile.19
$region0: #{tile.19}
  %s0 = inlined_call_operand.vmem [shape: f32[4,32], index: 0, kind: input, shape index: {}]
  %s1 = inlined_call_operand.vmem [shape: f32[1,128], index: 1, kind: output, shape index: {}]
  $region1: #{tile.19} parent=0
    #allocation0 [shape = 'u8[4096]{0}', space=vmem, size = 0x1000, scoped, tag = 'scoped mem for output reshape']
    #allocation1 [shape = 'u8[4096]{0}', space=vmem, size = 0x1000, scoped, tag = 'scoped mem for input reshape']
    %s3 = ssub.s32 16, 1
    %v4 = vld [vmem:[%s0] sm:%s3]
    %5 = vst [vmem:[#allocation1] sm:%s3] %v4
    %v6 = vld [vmem:[#allocation1] sm:$0x1]
    %vm7 = vcmask 261120
    %8 = vst.msk [vmem:[#allocation0] sm:$0x1] %vm7, %v6
    %s9 = scalar_lea.vmem [#allocation1], 3
    %v10 = vld [vmem:[%s9] sm:$0x1]
    %11 = vrot.lane.b32.xlu0 %v10, 96
    %v12 = vpop.permute.xlu0 %11
    %vm13 = vcmask 1048320
    %14 = vst.msk [vmem:[#allocation0] sm:$0x1] %vm13, %v12
    %s15 = scalar_lea.vmem [#allocation1], 2
    %v16 = vld [vmem:[%s15] sm:$0x1]
    %17 = vrot.lane.b32.xlu0 %v16, 64
    %v18 = vpop.permute.xlu0 %17
    %vm19 = vcmask 785920
    %20 = vst.msk [vmem:[#allocation0] sm:$0x1] %vm19, %v18
    %s21 = scalar_lea.vmem [#allocation1], 1
    %v22 = vld [vmem:[%s21] sm:$0x1]
    %23 = vrot.lane.b32.xlu0 %v22, 32
    %v24 = vpop.permute.xlu0 %23
    %vm25 = vcmask 523520
    %26 = vst.msk [vmem:[#allocation0] sm:$0x1] %vm25, %v24
    %s28 = ssub.s32 2, 1
    %v29 = vld [vmem:[#allocation0] sm:%s28]
    %s31 = ssub.s32 2, 1
    %32 = vst [vmem:[%s1] sm:%s31] %v29

// kernel: convnext_block.1
$region0: #{convnext_block.1}
  #allocation0 [shape = 'u32[]', space=smem, size = 0x4, offset = 0x4, fixed_abs, tag = 'smem constant byte address 0x4 - core index']
  #allocation1 [shape = 'u32[72,128]{1,0:T(1,128)}', space=vmem, size = 0x9000, scoped, tag = 'internal scratch']
  %s0 = inlined_call_operand.vmem [shape: f32[128,128], index: 0, kind: input, shape index: {}]
  %s1 = inlined_call_operand.vmem [shape: bf16[128,256], index: 1, kind: input, shape index: {}]
  %s2 = inlined_call_operand.vmem [shape: f32[1,256], index: 2, kind: input, shape index: {}]
  %s3 = inlined_call_operand.vmem [shape: bf16[256,128], index: 3, kind: input, shape index: {}]
  %s4 = inlined_call_operand.vmem [shape: f32[1,128], index: 4, kind: input, shape index: {}]
  %s5 = inlined_call_operand.vmem [shape: f32[128,128], index: 5, kind: output, shape index: {}]
  %s6 = sld [smem:[#allocation0]]
  $region30: #{convnext_block.1} parent=0
    _
  %s8 = ssub.s32 1, %s6
  %s9 = scalar_select 0, %s8, %s6
  // Predicated region
  $region2: #{convnext_block.1} parent=0 // pred_check
    _
  $region3: #{convnext_block.1} parent=0 // pred_check_branch
    %11 = sbr.rel (0) target = $region5
  $region4: #{convnext_block.1} parent=0 // pred_region
    _
  $region5: #{convnext_block.1} parent=0 // pred_fallthru
    _
  // Predicated region
  $region6: #{convnext_block.1} parent=0 // pred_check
    _
  $region7: #{convnext_block.1} parent=0 // pred_check_branch
    %13 = sbr.rel (0) target = $region9
  $region8: #{convnext_block.1} parent=0 // pred_region
    _
  $region9: #{convnext_block.1} parent=0 // pred_fallthru
    _
  // Predicated region
  $region10: #{convnext_block.1} parent=0 // pred_check
    _
  $region11: #{convnext_block.1} parent=0 // pred_check_branch
    %15 = sbr.rel (0) target = $region13
  $region12: #{convnext_block.1} parent=0 // pred_region
    _
  $region13: #{convnext_block.1} parent=0 // pred_fallthru
    _
  // Predicated region
  $region14: #{convnext_block.1} parent=0 // pred_check
    _
  $region15: #{convnext_block.1} parent=0 // pred_check_branch
    %17 = sbr.rel (0) target = $region17
  $region16: #{convnext_block.1} parent=0 // pred_region
    _
  $region17: #{convnext_block.1} parent=0 // pred_fallthru
    _
  // Predicated region
  $region18: #{convnext_block.1} parent=0 // pred_check
    _
  $region19: #{convnext_block.1} parent=0 // pred_check_branch
    %19 = sbr.rel (0) target = $region21
  $region20: #{convnext_block.1} parent=0 // pred_region
    _
  $region21: #{convnext_block.1} parent=0 // pred_fallthru
    _
  %v20 = vld [vmem:[%s0] sm:$0xff]
  %v21 = vld [vmem:[%s0 + $0x8] sm:$0xff]
  %v22 = vld [vmem:[%s0 + $0x10] sm:$0xff]
  %v23 = vld [vmem:[%s0 + $0x18] sm:$0xff]
  %v24 = vld [vmem:[%s0 + $0x20] sm:$0xff]
  %v25 = vld [vmem:[%s0 + $0x28] sm:$0xff]
  %v26 = vld [vmem:[%s0 + $0x30] sm:$0xff]
  %v27 = vld [vmem:[%s0 + $0x38] sm:$0xff]
  %v28 = vld [vmem:[%s0 + $0x40] sm:$0xff]
  %v29 = vld [vmem:[%s0 + $0x48] sm:$0xff]
  %v30 = vld [vmem:[%s0 + $0x50] sm:$0xff]
  %v31 = vld [vmem:[%s0 + $0x58] sm:$0xff]
  %v32 = vld [vmem:[%s0 + $0x60] sm:$0xff]
  %v33 = vld [vmem:[%s0 + $0x68] sm:$0xff]
  %v34 = vld [vmem:[%s0 + $0x70] sm:$0xff]
  %v35 = vld [vmem:[%s0 + $0x78] sm:$0xff]
  %v36 = vpack.c.bf16 %v21, %v20
  %v37 = vpack.c.bf16 %v23, %v22
  %v38 = vpack.c.bf16 %v25, %v24
  %v39 = vpack.c.bf16 %v27, %v26
  %v40 = vpack.c.bf16 %v29, %v28
  %v41 = vpack.c.bf16 %v31, %v30
  %v42 = vpack.c.bf16 %v33, %v32
  %v43 = vpack.c.bf16 %v35, %v34
  %v44 = vld [vmem:[%s1] sm:$0xff]
  %v45 = vld [vmem:[%s1 + $0x8] sm:$0xff]
  %v46 = vld [vmem:[%s1 + $0x10] sm:$0xff]
  %v47 = vld [vmem:[%s1 + $0x18] sm:$0xff]
  %v48 = vld [vmem:[%s1 + $0x20] sm:$0xff]
  %v49 = vld [vmem:[%s1 + $0x28] sm:$0xff]
  %v50 = vld [vmem:[%s1 + $0x30] sm:$0xff]
  %v51 = vld [vmem:[%s1 + $0x38] sm:$0xff]
  %v52 = vld [vmem:[%s1 + $0x40] sm:$0xff]
  %v53 = vld [vmem:[%s1 + $0x48] sm:$0xff]
  %v54 = vld [vmem:[%s1 + $0x50] sm:$0xff]
  %v55 = vld [vmem:[%s1 + $0x58] sm:$0xff]
  %v56 = vld [vmem:[%s1 + $0x60] sm:$0xff]
  %v57 = vld [vmem:[%s1 + $0x68] sm:$0xff]
  %v58 = vld [vmem:[%s1 + $0x70] sm:$0xff]
  %v59 = vld [vmem:[%s1 + $0x78] sm:$0xff]
  %v60 = vld [vmem:[%s2] sm:$0x3]
  %v62 = vperm.slane %v60, 0
  %v63 = vperm.slane %v60, 1
  %v82 = vunpack.c.l.b16 %v44
  %v83 = vunpack.c.h.b16 %v44
  %v84 = vunpack.c.l.b16 %v45
  %v85 = vunpack.c.h.b16 %v45
  %v86 = vunpack.c.l.b16 %v46
  %v87 = vunpack.c.h.b16 %v46
  %v88 = vunpack.c.l.b16 %v47
  %v89 = vunpack.c.h.b16 %v47
  %v90 = vunpack.c.l.b16 %v48
  %v91 = vunpack.c.h.b16 %v48
  %v92 = vunpack.c.l.b16 %v49
  %v93 = vunpack.c.h.b16 %v49
  %v94 = vunpack.c.l.b16 %v50
  %v95 = vunpack.c.h.b16 %v50
  %v96 = vunpack.c.l.b16 %v51
  %v97 = vunpack.c.h.b16 %v51
  %v98 = vunpack.c.l.b16 %v52
  %v99 = vunpack.c.h.b16 %v52
  %v100 = vunpack.c.l.b16 %v53
  %v101 = vunpack.c.h.b16 %v53
  %v102 = vunpack.c.l.b16 %v54
  %v103 = vunpack.c.h.b16 %v54
  %v104 = vunpack.c.l.b16 %v55
  %v105 = vunpack.c.h.b16 %v55
  %v106 = vunpack.c.l.b16 %v56
  %v107 = vunpack.c.h.b16 %v56
  %v108 = vunpack.c.l.b16 %v57
  %v109 = vunpack.c.h.b16 %v57
  %v110 = vunpack.c.l.b16 %v58
  %v111 = vunpack.c.h.b16 %v58
  %v112 = vunpack.c.l.b16 %v59
  %v113 = vunpack.c.h.b16 %v59
  %v114 = vpack.c.b16 %v84, %v82
  %v115 = vpack.c.b16 %v85, %v83
  %v116 = vpack.c.b16 %v88, %v86
  %v117 = vpack.c.b16 %v89, %v87
  %v118 = vpack.c.b16 %v92, %v90
  %v119 = vpack.c.b16 %v93, %v91
  %v120 = vpack.c.b16 %v96, %v94
  %v121 = vpack.c.b16 %v97, %v95
  %v122 = vpack.c.b16 %v100, %v98
  %v123 = vpack.c.b16 %v101, %v99
  %v124 = vpack.c.b16 %v104, %v102
  %v125 = vpack.c.b16 %v105, %v103
  %v126 = vpack.c.b16 %v108, %v106
  %v127 = vpack.c.b16 %v109, %v107
  %v128 = vpack.c.b16 %v112, %v110
  %v129 = vpack.c.b16 %v113, %v111
  %146 = vmatpush.bf16.msra.mxu0 %v128
  %147 = vmatpush.bf16.msra.mxu0 %v126
  %148 = vmatpush.bf16.msra.mxu0 %v124
  %149 = vmatpush.bf16.msra.mxu0 %v122
  %150 = vmatpush.bf16.msra.mxu0 %v120
  %151 = vmatpush.bf16.msra.mxu0 %v118
  %152 = vmatpush.bf16.msra.mxu0 %v116
  %153 = vmatpush.bf16.msra.mxu0 %v114
  %154 = vmatmul.bf16.gmra.mxu0 %v36
  %v155 = vpop.f32.mrf.mxu0
  %v156 = vadd.f32 %v62, %v155
  %v157 = vpop.f32.mrf.mxu0
  %v158 = vadd.f32 %v62, %v157
  %159 = vmatmul.bf16.gmra.mxu0 %v37
  %v160 = vpop.f32.mrf.mxu0
  %v161 = vadd.f32 %v62, %v160
  %v162 = vpop.f32.mrf.mxu0
  %v163 = vadd.f32 %v62, %v162
  %164 = vmatmul.bf16.gmra.mxu0 %v38
  %v165 = vpop.f32.mrf.mxu0
  %v166 = vadd.f32 %v62, %v165
  %v167 = vpop.f32.mrf.mxu0
  %v168 = vadd.f32 %v62, %v167
  %169 = vmatmul.bf16.gmra.mxu0 %v39
  %v170 = vpop.f32.mrf.mxu0
  %v171 = vadd.f32 %v62, %v170
  %v172 = vpop.f32.mrf.mxu0
  %v173 = vadd.f32 %v62, %v172
  %174 = vmatmul.bf16.gmra.mxu0 %v40
  %v175 = vpop.f32.mrf.mxu0
  %v176 = vadd.f32 %v62, %v175
  %v177 = vpop.f32.mrf.mxu0
  %v178 = vadd.f32 %v62, %v177
  %179 = vmatmul.bf16.gmra.mxu0 %v41
  %v180 = vpop.f32.mrf.mxu0
  %v181 = vadd.f32 %v62, %v180
  %v182 = vpop.f32.mrf.mxu0
  %v183 = vadd.f32 %v62, %v182
  %184 = vmatmul.bf16.gmra.mxu0 %v42
  %v185 = vpop.f32.mrf.mxu0
  %v186 = vadd.f32 %v62, %v185
  %v187 = vpop.f32.mrf.mxu0
  %v188 = vadd.f32 %v62, %v187
  %189 = vmatmul.bf16.gmra.mxu0 %v43
  %v190 = vpop.f32.mrf.mxu0
  %v191 = vadd.f32 %v62, %v190
  %v192 = vpop.f32.mrf.mxu0
  %v193 = vadd.f32 %v62, %v192
  %194 = vdwg.mxu0
  %195 = vmatpush.bf16.msra.mxu0 %v129
  %196 = vmatpush.bf16.msra.mxu0 %v127
  %197 = vmatpush.bf16.msra.mxu0 %v125
  %198 = vmatpush.bf16.msra.mxu0 %v123
  %199 = vmatpush.bf16.msra.mxu0 %v121
  %200 = vmatpush.bf16.msra.mxu0 %v119
  %201 = vmatpush.bf16.msra.mxu0 %v117
  %202 = vmatpush.bf16.msra.mxu0 %v115
  %203 = vmatmul.bf16.gmra.mxu0 %v36
  %v204 = vpop.f32.mrf.mxu0
  %v205 = vadd.f32 %v63, %v204
  %v206 = vpop.f32.mrf.mxu0
  %v207 = vadd.f32 %v63, %v206
  %208 = vmatmul.bf16.gmra.mxu0 %v37
  %v209 = vpop.f32.mrf.mxu0
  %v210 = vadd.f32 %v63, %v209
  %v211 = vpop.f32.mrf.mxu0
  %v212 = vadd.f32 %v63, %v211
  %213 = vmatmul.bf16.gmra.mxu0 %v38
  %v214 = vpop.f32.mrf.mxu0
  %v215 = vadd.f32 %v63, %v214
  %v216 = vpop.f32.mrf.mxu0
  %v217 = vadd.f32 %v63, %v216
  %218 = vmatmul.bf16.gmra.mxu0 %v39
  %v219 = vpop.f32.mrf.mxu0
  %v220 = vadd.f32 %v63, %v219
  %v221 = vpop.f32.mrf.mxu0
  %v222 = vadd.f32 %v63, %v221
  %223 = vmatmul.bf16.gmra.mxu0 %v40
  %v224 = vpop.f32.mrf.mxu0
  %v225 = vadd.f32 %v63, %v224
  %v226 = vpop.f32.mrf.mxu0
  %v227 = vadd.f32 %v63, %v226
  %228 = vmatmul.bf16.gmra.mxu0 %v41
  %v229 = vpop.f32.mrf.mxu0
  %v230 = vadd.f32 %v63, %v229
  %v231 = vpop.f32.mrf.mxu0
  %v232 = vadd.f32 %v63, %v231
  %233 = vmatmul.bf16.gmra.mxu0 %v42
  %v234 = vpop.f32.mrf.mxu0
  %v235 = vadd.f32 %v63, %v234
  %v236 = vpop.f32.mrf.mxu0
  %v237 = vadd.f32 %v63, %v236
  %238 = vmatmul.bf16.gmra.mxu0 %v43
  %v239 = vpop.f32.mrf.mxu0
  %v240 = vadd.f32 %v63, %v239
  %v241 = vpop.f32.mrf.mxu0
  %v242 = vadd.f32 %v63, %v241
  %243 = vdwg.mxu0
  %v244 = vmax.f32 %v156, 0.0
  %v245 = vmax.f32 %v205, 0.0
  %v246 = vmax.f32 %v158, 0.0
  %v247 = vmax.f32 %v207, 0.0
  %v248 = vmax.f32 %v161, 0.0
  %v249 = vmax.f32 %v210, 0.0
  %v250 = vmax.f32 %v163, 0.0
  %v251 = vmax.f32 %v212, 0.0
  %v252 = vmax.f32 %v166, 0.0
  %v253 = vmax.f32 %v215, 0.0
  %v254 = vmax.f32 %v168, 0.0
  %v255 = vmax.f32 %v217, 0.0
  %v256 = vmax.f32 %v171, 0.0
  %v257 = vmax.f32 %v220, 0.0
  %v258 = vmax.f32 %v173, 0.0
  %v259 = vmax.f32 %v222, 0.0
  %v260 = vmax.f32 %v176, 0.0
  %v261 = vmax.f32 %v225, 0.0
  %v262 = vmax.f32 %v178, 0.0
  %v263 = vmax.f32 %v227, 0.0
  %v264 = vmax.f32 %v181, 0.0
  %v265 = vmax.f32 %v230, 0.0
  %v266 = vmax.f32 %v183, 0.0
  %v267 = vmax.f32 %v232, 0.0
  %v268 = vmax.f32 %v186, 0.0
  %v269 = vmax.f32 %v235, 0.0
  %v270 = vmax.f32 %v188, 0.0
  %v271 = vmax.f32 %v237, 0.0
  %v272 = vmax.f32 %v191, 0.0
  %v273 = vmax.f32 %v240, 0.0
  %v274 = vmax.f32 %v193, 0.0
  %v275 = vmax.f32 %v242, 0.0
  %v276 = vpack.c.bf16 %v246, %v244
  %v277 = vpack.c.bf16 %v247, %v245
  %v278 = vpack.c.bf16 %v250, %v248
  %v279 = vpack.c.bf16 %v251, %v249
  %v280 = vpack.c.bf16 %v254, %v252
  %v281 = vpack.c.bf16 %v255, %v253
  %v282 = vpack.c.bf16 %v258, %v256
  %v283 = vpack.c.bf16 %v259, %v257
  %v284 = vpack.c.bf16 %v262, %v260
  %v285 = vpack.c.bf16 %v263, %v261
  %v286 = vpack.c.bf16 %v266, %v264
  %v287 = vpack.c.bf16 %v267, %v265
  %v288 = vpack.c.bf16 %v270, %v268
  %v289 = vpack.c.bf16 %v271, %v269
  %v290 = vpack.c.bf16 %v274, %v272
  %v291 = vpack.c.bf16 %v275, %v273
  %v292 = vld [vmem:[%s3] sm:$0xf]
  %v293 = vld [vmem:[%s3 + $0x4] sm:$0xf]
  %v294 = vld [vmem:[%s3 + $0x8] sm:$0xf]
  %v295 = vld [vmem:[%s3 + $0xc] sm:$0xf]
  %v296 = vld [vmem:[%s3 + $0x10] sm:$0xf]
  %v297 = vld [vmem:[%s3 + $0x14] sm:$0xf]
  %v298 = vld [vmem:[%s3 + $0x18] sm:$0xf]
  %v299 = vld [vmem:[%s3 + $0x1c] sm:$0xf]
  %v300 = vld [vmem:[%s3 + $0x20] sm:$0xf]
  %v301 = vld [vmem:[%s3 + $0x24] sm:$0xf]
  %v302 = vld [vmem:[%s3 + $0x28] sm:$0xf]
  %v303 = vld [vmem:[%s3 + $0x2c] sm:$0xf]
  %v304 = vld [vmem:[%s3 + $0x30] sm:$0xf]
  %v305 = vld [vmem:[%s3 + $0x34] sm:$0xf]
  %v306 = vld [vmem:[%s3 + $0x38] sm:$0xf]
  %v307 = vld [vmem:[%s3 + $0x3c] sm:$0xf]
  %v308 = vld [vmem:[%s3 + $0x40] sm:$0xf]
  %v309 = vld [vmem:[%s3 + $0x44] sm:$0xf]
  %v310 = vld [vmem:[%s3 + $0x48] sm:$0xf]
  %v311 = vld [vmem:[%s3 + $0x4c] sm:$0xf]
  %v312 = vld [vmem:[%s3 + $0x50] sm:$0xf]
  %v313 = vld [vmem:[%s3 + $0x54] sm:$0xf]
  %v314 = vld [vmem:[%s3 + $0x58] sm:$0xf]
  %v315 = vld [vmem:[%s3 + $0x5c] sm:$0xf]
  %v316 = vld [vmem:[%s3 + $0x60] sm:$0xf]
  %v317 = vld [vmem:[%s3 + $0x64] sm:$0xf]
  %v318 = vld [vmem:[%s3 + $0x68] sm:$0xf]
  %v319 = vld [vmem:[%s3 + $0x6c] sm:$0xf]
  %v320 = vld [vmem:[%s3 + $0x70] sm:$0xf]
  %v321 = vld [vmem:[%s3 + $0x74] sm:$0xf]
  %v322 = vld [vmem:[%s3 + $0x78] sm:$0xf]
  %v323 = vld [vmem:[%s3 + $0x7c] sm:$0xf]
  %v324 = vld [vmem:[%s4] sm:$0x1]
  %v326 = vperm.slane %v324, 0
  %v360 = vunpack.c.l.b16 %v292
  %v361 = vunpack.c.l.b16 %v293
  %v362 = vunpack.c.l.b16 %v294
  %v363 = vunpack.c.l.b16 %v295
  %v364 = vunpack.c.l.b16 %v296
  %v365 = vunpack.c.l.b16 %v297
  %v366 = vunpack.c.l.b16 %v298
  %v367 = vunpack.c.l.b16 %v299
  %v368 = vunpack.c.l.b16 %v300
  %v369 = vunpack.c.l.b16 %v301
  %v370 = vunpack.c.l.b16 %v302
  %v371 = vunpack.c.l.b16 %v303
  %v372 = vunpack.c.l.b16 %v304
  %v373 = vunpack.c.l.b16 %v305
  %v374 = vunpack.c.l.b16 %v306
  %v375 = vunpack.c.l.b16 %v307
  %v376 = vunpack.c.l.b16 %v308
  %v377 = vunpack.c.l.b16 %v309
  %v378 = vunpack.c.l.b16 %v310
  %v379 = vunpack.c.l.b16 %v311
  %v380 = vunpack.c.l.b16 %v312
  %v381 = vunpack.c.l.b16 %v313
  %v382 = vunpack.c.l.b16 %v314
  %v383 = vunpack.c.l.b16 %v315
  %v384 = vunpack.c.l.b16 %v316
  %v385 = vunpack.c.l.b16 %v317
  %v386 = vunpack.c.l.b16 %v318
  %v387 = vunpack.c.l.b16 %v319
  %v388 = vunpack.c.l.b16 %v320
  %v389 = vunpack.c.l.b16 %v321
  %v390 = vunpack.c.l.b16 %v322
  %v391 = vunpack.c.l.b16 %v323
  %v392 = vpack.c.b16 %v361, %v360
  %v393 = vpack.c.b16 %v363, %v362
  %v394 = vpack.c.b16 %v365, %v364
  %v395 = vpack.c.b16 %v367, %v366
  %v396 = vpack.c.b16 %v369, %v368
  %v397 = vpack.c.b16 %v371, %v370
  %v398 = vpack.c.b16 %v373, %v372
  %v399 = vpack.c.b16 %v375, %v374
  %v400 = vpack.c.b16 %v377, %v376
  %v401 = vpack.c.b16 %v379, %v378
  %v402 = vpack.c.b16 %v381, %v380
  %v403 = vpack.c.b16 %v383, %v382
  %v404 = vpack.c.b16 %v385, %v384
  %v405 = vpack.c.b16 %v387, %v386
  %v406 = vpack.c.b16 %v389, %v388
  %v407 = vpack.c.b16 %v391, %v390
  %424 = vmatpush.bf16.msra.mxu0 %v399
  %425 = vmatpush.bf16.msra.mxu0 %v398
  %426 = vmatpush.bf16.msra.mxu0 %v397
  %427 = vmatpush.bf16.msra.mxu0 %v396
  %428 = vmatpush.bf16.msra.mxu0 %v395
  %429 = vmatpush.bf16.msra.mxu0 %v394
  %430 = vmatpush.bf16.msra.mxu0 %v393
  %431 = vmatpush.bf16.msra.mxu0 %v392
  %432 = vmatmul.bf16.gmra.mxu0 %v276
  %v433 = vpop.f32.mrf.mxu0
  %v434 = vadd.f32 %v326, %v433
  %v435 = vpop.f32.mrf.mxu0
  %v436 = vadd.f32 %v326, %v435
  %437 = vmatmul.bf16.gmra.mxu0 %v278
  %v438 = vpop.f32.mrf.mxu0
  %v439 = vadd.f32 %v326, %v438
  %v440 = vpop.f32.mrf.mxu0
  %v441 = vadd.f32 %v326, %v440
  %442 = vmatmul.bf16.gmra.mxu0 %v280
  %v443 = vpop.f32.mrf.mxu0
  %v444 = vadd.f32 %v326, %v443
  %v445 = vpop.f32.mrf.mxu0
  %v446 = vadd.f32 %v326, %v445
  %447 = vmatmul.bf16.gmra.mxu0 %v282
  %v448 = vpop.f32.mrf.mxu0
  %v449 = vadd.f32 %v326, %v448
  %v450 = vpop.f32.mrf.mxu0
  %v451 = vadd.f32 %v326, %v450
  %452 = vmatmul.bf16.gmra.mxu0 %v284
  %v453 = vpop.f32.mrf.mxu0
  %v454 = vadd.f32 %v326, %v453
  %v455 = vpop.f32.mrf.mxu0
  %v456 = vadd.f32 %v326, %v455
  %457 = vmatmul.bf16.gmra.mxu0 %v286
  %v458 = vpop.f32.mrf.mxu0
  %v459 = vadd.f32 %v326, %v458
  %v460 = vpop.f32.mrf.mxu0
  %v461 = vadd.f32 %v326, %v460
  %462 = vmatmul.bf16.gmra.mxu0 %v288
  %v463 = vpop.f32.mrf.mxu0
  %v464 = vadd.f32 %v326, %v463
  %v465 = vpop.f32.mrf.mxu0
  %v466 = vadd.f32 %v326, %v465
  %467 = vmatmul.bf16.gmra.mxu0 %v290
  %v468 = vpop.f32.mrf.mxu0
  %v469 = vadd.f32 %v326, %v468
  %v470 = vpop.f32.mrf.mxu0
  %v471 = vadd.f32 %v326, %v470
  %472 = vdwg.mxu0
  %473 = vmatpush.bf16.msra.mxu0 %v407
  %474 = vmatpush.bf16.msra.mxu0 %v406
  %475 = vmatpush.bf16.msra.mxu0 %v405
  %476 = vmatpush.bf16.msra.mxu0 %v404
  %477 = vmatpush.bf16.msra.mxu0 %v403
  %478 = vmatpush.bf16.msra.mxu0 %v402
  %479 = vmatpush.bf16.msra.mxu0 %v401
  %480 = vmatpush.bf16.msra.mxu0 %v400
  %481 = vmatmul.bf16.gmra.mxu0 %v277
  %v482 = vpop.f32.mrf.mxu0
  %v483 = vadd.f32 %v434, %v482
  %v484 = vpop.f32.mrf.mxu0
  %v485 = vadd.f32 %v436, %v484
  %486 = vmatmul.bf16.gmra.mxu0 %v279
  %v487 = vpop.f32.mrf.mxu0
  %v488 = vadd.f32 %v439, %v487
  %v489 = vpop.f32.mrf.mxu0
  %v490 = vadd.f32 %v441, %v489
  %491 = vmatmul.bf16.gmra.mxu0 %v281
  %v492 = vpop.f32.mrf.mxu0
  %v493 = vadd.f32 %v444, %v492
  %v494 = vpop.f32.mrf.mxu0
  %v495 = vadd.f32 %v446, %v494
  %496 = vmatmul.bf16.gmra.mxu0 %v283
  %v497 = vpop.f32.mrf.mxu0
  %v498 = vadd.f32 %v449, %v497
  %v499 = vpop.f32.mrf.mxu0
  %v500 = vadd.f32 %v451, %v499
  %501 = vmatmul.bf16.gmra.mxu0 %v285
  %v502 = vpop.f32.mrf.mxu0
  %v503 = vadd.f32 %v454, %v502
  %v504 = vpop.f32.mrf.mxu0
  %v505 = vadd.f32 %v456, %v504
  %506 = vmatmul.bf16.gmra.mxu0 %v287
  %v507 = vpop.f32.mrf.mxu0
  %v508 = vadd.f32 %v459, %v507
  %v509 = vpop.f32.mrf.mxu0
  %v510 = vadd.f32 %v461, %v509
  %511 = vmatmul.bf16.gmra.mxu0 %v289
  %v512 = vpop.f32.mrf.mxu0
  %v513 = vadd.f32 %v464, %v512
  %v514 = vpop.f32.mrf.mxu0
  %v515 = vadd.f32 %v466, %v514
  %516 = vmatmul.bf16.gmra.mxu0 %v291
  %v517 = vpop.f32.mrf.mxu0
  %v518 = vadd.f32 %v469, %v517
  %v519 = vpop.f32.mrf.mxu0
  %v520 = vadd.f32 %v471, %v519
  %521 = vdwg.mxu0
  %v522 = vadd.f32 %v20, %v483
  %v523 = vadd.f32 %v21, %v485
  %v524 = vadd.f32 %v22, %v488
  %v525 = vadd.f32 %v23, %v490
  %v526 = vadd.f32 %v24, %v493
  %v527 = vadd.f32 %v25, %v495
  %v528 = vadd.f32 %v26, %v498
  %v529 = vadd.f32 %v27, %v500
  %v530 = vadd.f32 %v28, %v503
  %v531 = vadd.f32 %v29, %v505
  %v532 = vadd.f32 %v30, %v508
  %v533 = vadd.f32 %v31, %v510
  %v534 = vadd.f32 %v32, %v513
  %v535 = vadd.f32 %v33, %v515
  %v536 = vadd.f32 %v34, %v518
  %v537 = vadd.f32 %v35, %v520
  %v538 = vmax.f32 %v522, 0.0
  %v539 = vmax.f32 %v523, 0.0
  %v540 = vmax.f32 %v524, 0.0
  %v541 = vmax.f32 %v525, 0.0
  %v542 = vmax.f32 %v526, 0.0
  %v543 = vmax.f32 %v527, 0.0
  %v544 = vmax.f32 %v528, 0.0
  %v545 = vmax.f32 %v529, 0.0
  %v546 = vmax.f32 %v530, 0.0
  %v547 = vmax.f32 %v531, 0.0
  %v548 = vmax.f32 %v532, 0.0
  %v549 = vmax.f32 %v533, 0.0
  %v550 = vmax.f32 %v534, 0.0
  %v551 = vmax.f32 %v535, 0.0
  %v552 = vmax.f32 %v536, 0.0
  %v553 = vmax.f32 %v537, 0.0
  %554 = vst [vmem:[%s5] sm:$0xff] %v538
  %555 = vst [vmem:[%s5 + $0x8] sm:$0xff] %v539
  %556 = vst [vmem:[%s5 + $0x10] sm:$0xff] %v540
  %557 = vst [vmem:[%s5 + $0x18] sm:$0xff] %v541
  %558 = vst [vmem:[%s5 + $0x20] sm:$0xff] %v542
  %559 = vst [vmem:[%s5 + $0x28] sm:$0xff] %v543
  %560 = vst [vmem:[%s5 + $0x30] sm:$0xff] %v544
  %561 = vst [vmem:[%s5 + $0x38] sm:$0xff] %v545
  %562 = vst [vmem:[%s5 + $0x40] sm:$0xff] %v546
  %563 = vst [vmem:[%s5 + $0x48] sm:$0xff] %v547
  %564 = vst [vmem:[%s5 + $0x50] sm:$0xff] %v548
  %565 = vst [vmem:[%s5 + $0x58] sm:$0xff] %v549
  %566 = vst [vmem:[%s5 + $0x60] sm:$0xff] %v550
  %567 = vst [vmem:[%s5 + $0x68] sm:$0xff] %v551
  %568 = vst [vmem:[%s5 + $0x70] sm:$0xff] %v552
  %569 = vst [vmem:[%s5 + $0x78] sm:$0xff] %v553
  // Predicated region
  $region22: #{convnext_block.1} parent=0 // pred_check
    _
  $region23: #{convnext_block.1} parent=0 // pred_check_branch
    %571 = sbr.rel (0) target = $region25
  $region24: #{convnext_block.1} parent=0 // pred_region
    _
  $region25: #{convnext_block.1} parent=0 // pred_fallthru
    _
  // Predicated region
  $region26: #{convnext_block.1} parent=0 // pred_check
    _
  $region27: #{convnext_block.1} parent=0 // pred_check_branch
    %573 = sbr.rel (0) target = $region29
  $region28: #{convnext_block.1} parent=0 // pred_region
    _
  $region29: #{convnext_block.1} parent=0 // pred_fallthru
    _

</llo_original>
